<compile_context>
chip_gen: v7x
topology: tpu7x:2x2x1
jax: 0.10.0
libtpu: 0.0.40
codegen_flags: <defaults>
</compile_context>

<pallas_src>
import jax
import jax.numpy as jnp
from jax.experimental import pallas as pl
from jax.experimental.pallas import tpu as pltpu

_LANE = 128
_SUBLANE = 16  # min sublane tile for bf16 activations


def _round_up(x, m):
    return (x + m - 1) // m * m


def _adapter_kernel(x_ref, w1_ref, b1_ref, w2_ref, b2_ref, o_ref):
    # y = original_module(x) = x @ W1 + b1  (bf16 MXU inputs, f32 accumulation)
    x = x_ref[...]
    b1 = b1_ref[...]          # f32, loaded once, broadcast in the add
    b2 = b2_ref[...]
    y = jnp.dot(x, w1_ref[...], preferred_element_type=jnp.float32) + b1
    # z = sequential_module(y) = y @ W2 + b2  (re-cast y to bf16 for the MXU)
    z = jnp.dot(y.astype(jnp.bfloat16), w2_ref[...],
                preferred_element_type=jnp.float32) + b2
    # residual in f32; downcast only at the store
    o_ref[...] = (y + z).astype(o_ref.dtype)


def sequential_adapter(x, w1, b1, w2, b2, *, row_tile=None):
    """Fused SequentialAdapter forward.

    x  : [..., hidden]    (any leading batch dims)
    w* : [hidden, hidden] PyTorch nn.Linear layout (out_features, in_features)
    b* : [hidden]
    """
    orig_dtype = x.dtype
    *lead, hidden = x.shape
    rows = 1
    for d in lead:
        rows *= d
    x2 = x.reshape(rows, hidden)

    # --- lane-dense padding of the hidden dim --------------------------------
    hp = _round_up(hidden, _LANE)
    pad_h = hp - hidden

    # nn.Linear stores W as [out, in]; kernel computes x @ W_t with W_t = [in, out].
    w1t = jnp.transpose(w1)
    w2t = jnp.transpose(w2)
    if pad_h:
        x2 = jnp.pad(x2, ((0, 0), (0, pad_h)))
        w1t = jnp.pad(w1t, ((0, pad_h), (0, pad_h)))
        w2t = jnp.pad(w2t, ((0, pad_h), (0, pad_h)))
        b1 = jnp.pad(b1, (0, pad_h))
        b2 = jnp.pad(b2, (0, pad_h))

    # --- row tiling: big tiles, but keep >=2 parallel grid steps when possible ---
    if row_tile is None:
        if rows >= 512:
            row_tile = 256
        else:
            row_tile = max(_SUBLANE, _round_up(pl.cdiv(rows, 2), _SUBLANE))
    rows_p = _round_up(rows, row_tile)
    if rows_p != rows:
        x2 = jnp.pad(x2, ((0, rows_p - rows), (0, 0)))
    grid = (rows_p // row_tile,)

    # bf16 MXU operands; biases stay f32 (f32 VPU add path, important on v5e).
    x_bf = x2.astype(jnp.bfloat16)
    w1_bf = w1t.astype(jnp.bfloat16)
    w2_bf = w2t.astype(jnp.bfloat16)
    b1f = b1.reshape(1, hp).astype(jnp.float32)
    b2f = b2.reshape(1, hp).astype(jnp.float32)

    # Explicit VMEM budget: double-buffered x (bf16) + out (f32) tiles,
    # double-buffered resident weights (bf16) and biases (f32).
    est = (2 * (row_tile * hp * 2 + row_tile * hp * 4)
           + 2 * 2 * (hp * hp * 2)
           + 2 * 2 * (hp * 4))
    vmem_limit = int(min(max(2 * est, 16 * 1024 * 1024), 64 * 1024 * 1024))
    # TODO(synk): for very large hidden (>~2K, v7x's 64 MiB VMEM) the two resident
    # weights should be tiled over an extra hidden grid axis with a scratch accumulator
    # instead of being held whole; not needed at these adapter sizes.

    out_p = pl.pallas_call(
        _adapter_kernel,
        out_shape=jax.ShapeDtypeStruct((rows_p, hp), orig_dtype),
        grid_spec=pltpu.PrefetchScalarGridSpec(
            num_scalar_prefetch=0,
            grid=grid,
            in_specs=[
                pl.BlockSpec((row_tile, hp), lambda i: (i, 0)),  # x tile
                pl.BlockSpec((hp, hp), lambda i: (0, 0)),        # W1 (resident)
                pl.BlockSpec((1, hp), lambda i: (0, 0)),         # b1
                pl.BlockSpec((hp, hp), lambda i: (0, 0)),        # W2 (resident)
                pl.BlockSpec((1, hp), lambda i: (0, 0)),         # b2
            ],
            out_specs=pl.BlockSpec((row_tile, hp), lambda i: (i, 0)),
        ),
        compiler_params=pltpu.CompilerParams(
            dimension_semantics=("parallel",),
            vmem_limit_bytes=vmem_limit,
        ),
    )(x_bf, w1_bf, b1f, w2_bf, b2f)

    out = out_p[:rows, :hidden]
    return out.reshape(*lead, hidden)


def _reference(x, w1, b1, w2, b2):
    """Precision-matched reference: bf16 MXU inputs, f32 accumulation."""
    xb = x.astype(jnp.bfloat16)
    w1b = jnp.transpose(w1).astype(jnp.bfloat16)
    w2b = jnp.transpose(w2).astype(jnp.bfloat16)
    y = jnp.dot(xb, w1b, preferred_element_type=jnp.float32) + b1
    z = jnp.dot(y.astype(jnp.bfloat16), w2b, preferred_element_type=jnp.float32) + b2
    return (y + z).astype(x.dtype)


if __name__ == "__main__":
    # Lane-dense "small" config: rows = 256 -> 2 parallel grid steps of 128 rows.
    batch, seq, hidden = 2, 128, 256
    key = jax.random.PRNGKey(0)
    kx, k1, k2, k3, k4 = jax.random.split(key, 5)

    x = jax.random.normal(kx, (batch, seq, hidden), dtype=jnp.float32)
    scale = 1.0 / jnp.sqrt(hidden)
    # PyTorch nn.Linear parameter layout: W [out, in], b [out].
    w1 = jax.random.uniform(k1, (hidden, hidden), jnp.float32, -scale, scale)
    b1 = jax.random.uniform(k2, (hidden,), jnp.float32, -scale, scale)
    w2 = jax.random.uniform(k3, (hidden, hidden), jnp.float32, -scale, scale)
    b2 = jax.random.uniform(k4, (hidden,), jnp.float32, -scale, scale)

    out = jax.block_until_ready(sequential_adapter(x, w1, b1, w2, b2))
    ref = _reference(x, w1, b1, w2, b2)
    assert out.shape == (batch, seq, hidden)
    assert jnp.allclose(out, ref, atol=1e-2, rtol=1e-2), "mismatch vs reference"

    # Second tiny config (hidden=32) to exercise the hidden/row padding path.
    bs, ss, hs = 2, 8, 32
    x_s = jax.random.normal(jax.random.PRNGKey(1), (bs, ss, hs), dtype=jnp.float32)
    w1s, b1s = w1[:hs, :hs], b1[:hs]
    w2s, b2s = w2[:hs, :hs], b2[:hs]
    out_s = jax.block_until_ready(sequential_adapter(x_s, w1s, b1s, w2s, b2s))
    ref_s = _reference(x_s, w1s, b1s, w2s, b2s)
    assert out_s.shape == (bs, ss, hs)
    assert jnp.allclose(out_s, ref_s, atol=1e-2, rtol=1e-2), "mismatch (padded path)"

    print("KERNEL_OK")
</pallas_src>

<mosaic_0001>
module attributes {stable_mosaic.version = 11 : i64} {
  func.func @_adapter_kernel(%arg0: i32, %arg1: memref<128x256xbf16, #tpu.memory_space<vmem>>, %arg2: memref<256x256xbf16, #tpu.memory_space<vmem>>, %arg3: memref<1x256xf32, #tpu.memory_space<vmem>>, %arg4: memref<256x256xbf16, #tpu.memory_space<vmem>>, %arg5: memref<1x256xf32, #tpu.memory_space<vmem>>, %arg6: memref<128x256xf32, #tpu.memory_space<vmem>>) attributes {dimension_semantics = [#tpu.dimension_semantics<parallel>], iteration_bounds = array<i64: 2>, scalar_prefetch = 0 : i64, scratch_operands = 0 : i64, tpu.core_type = #tpu.core_type<tc>, window_params = [{transform_indices = @transform_0, window_bounds = array<i64: 128, 256>}, {pipeline_mode = #tpu.pipeline_mode<synchronous>, transform_indices = @transform_1, window_bounds = array<i64: 256, 256>}, {pipeline_mode = #tpu.pipeline_mode<synchronous>, transform_indices = @transform_2, window_bounds = array<i64: 1, 256>}, {pipeline_mode = #tpu.pipeline_mode<synchronous>, transform_indices = @transform_3, window_bounds = array<i64: 256, 256>}, {pipeline_mode = #tpu.pipeline_mode<synchronous>, transform_indices = @transform_4, window_bounds = array<i64: 1, 256>}, {transform_indices = @transform_5, window_bounds = array<i64: 128, 256>}]} {
    %c0 = arith.constant 0 : index
    %c0_0 = arith.constant 0 : index
    %0 = vector.load %arg1[%c0, %c0_0] : memref<128x256xbf16, #tpu.memory_space<vmem>>, vector<128x256xbf16>
    %c0_1 = arith.constant 0 : index
    %c0_2 = arith.constant 0 : index
    %1 = vector.load %arg3[%c0_1, %c0_2] : memref<1x256xf32, #tpu.memory_space<vmem>>, vector<1x256xf32>
    %c0_3 = arith.constant 0 : index
    %c0_4 = arith.constant 0 : index
    %2 = vector.load %arg5[%c0_3, %c0_4] : memref<1x256xf32, #tpu.memory_space<vmem>>, vector<1x256xf32>
    %c0_5 = arith.constant 0 : index
    %c0_6 = arith.constant 0 : index
    %3 = vector.load %arg2[%c0_5, %c0_6] : memref<256x256xbf16, #tpu.memory_space<vmem>>, vector<256x256xbf16>
    %cst = arith.constant dense<0.000000e+00> : vector<128x256xf32>
    %4 = tpu.matmul %0, %3, %cst {dimension_numbers = #tpu.dot_dimension_numbers<[1], [0], [0], [1], [0, 0, 1, 1], [], []>} : vector<128x256xbf16>, vector<256x256xbf16>, vector<128x256xf32> -> vector<128x256xf32>
    %5 = vector.broadcast %1 : vector<1x256xf32> to vector<128x256xf32>
    %6 = arith.addf %4, %5 : vector<128x256xf32>
    %7 = arith.truncf %6 : vector<128x256xf32> to vector<128x256xbf16>
    %c0_7 = arith.constant 0 : index
    %c0_8 = arith.constant 0 : index
    %8 = vector.load %arg4[%c0_7, %c0_8] : memref<256x256xbf16, #tpu.memory_space<vmem>>, vector<256x256xbf16>
    %cst_9 = arith.constant dense<0.000000e+00> : vector<128x256xf32>
    %9 = tpu.matmul %7, %8, %cst_9 {dimension_numbers = #tpu.dot_dimension_numbers<[1], [0], [0], [1], [0, 0, 1, 1], [], []>} : vector<128x256xbf16>, vector<256x256xbf16>, vector<128x256xf32> -> vector<128x256xf32>
    %10 = vector.broadcast %2 : vector<1x256xf32> to vector<128x256xf32>
    %11 = arith.addf %9, %10 : vector<128x256xf32>
    %12 = arith.addf %6, %11 : vector<128x256xf32>
    %c0_10 = arith.constant 0 : index
    %c0_11 = arith.constant 0 : index
    %13 = vector.load %arg6[%c0_10, %c0_11] : memref<128x256xf32, #tpu.memory_space<vmem>>, vector<128x256xf32>
    tpu.vector_store %arg6[%c0_10, %c0_11], %12 {strides = array<i32>} : memref<128x256xf32, #tpu.memory_space<vmem>>, vector<128x256xf32>,
    return
  }
  func.func @transform_0(%arg0: i32) -> (i32, i32) {
    %c0_i32 = arith.constant 0 : i32
    %c0_i32_0 = arith.constant 0 : i32
    return %arg0, %c0_i32 : i32, i32
  }
  func.func @transform_1(%arg0: i32) -> (i32, i32) {
    %c0_i32 = arith.constant 0 : i32
    %c0_i32_0 = arith.constant 0 : i32
    %c0_i32_1 = arith.constant 0 : i32
    return %c0_i32, %c0_i32_0 : i32, i32
  }
  func.func @transform_2(%arg0: i32) -> (i32, i32) {
    %c0_i32 = arith.constant 0 : i32
    %c0_i32_0 = arith.constant 0 : i32
    %c0_i32_1 = arith.constant 0 : i32
    return %c0_i32, %c0_i32_0 : i32, i32
  }
  func.func @transform_3(%arg0: i32) -> (i32, i32) {
    %c0_i32 = arith.constant 0 : i32
    %c0_i32_0 = arith.constant 0 : i32
    %c0_i32_1 = arith.constant 0 : i32
    return %c0_i32, %c0_i32_0 : i32, i32
  }
  func.func @transform_4(%arg0: i32) -> (i32, i32) {
    %c0_i32 = arith.constant 0 : i32
    %c0_i32_0 = arith.constant 0 : i32
    %c0_i32_1 = arith.constant 0 : i32
    return %c0_i32, %c0_i32_0 : i32, i32
  }
  func.func @transform_5(%arg0: i32) -> (i32, i32) {
    %c0_i32 = arith.constant 0 : i32
    %c0_i32_0 = arith.constant 0 : i32
    return %arg0, %c0_i32 : i32, i32
  }
}

</mosaic_0001>

<llo_original>
// kernel: tpu_custom_call.1
$region0: #{tpu_custom_call.1}
  #allocation0 [shape = 'u32[]', space=smem, size = 0x4, offset = 0x4, fixed_abs, tag = 'smem constant byte address 0x4 - core index']
  #allocation1 [shape = 'u32[144,128]{1,0:T(1,128)}', space=vmem, size = 0x12000, scoped, tag = 'internal scratch']
  %s0 = inlined_call_operand.hbm [shape: bf16[256,256], index: 0, kind: input, shape index: {}]
  %s1 = inlined_call_operand.hbm [shape: bf16[256,256], index: 1, kind: input, shape index: {}]
  %s2 = inlined_call_operand.vmem [shape: f32[1,256], index: 2, kind: input, shape index: {}]
  %s3 = inlined_call_operand.hbm [shape: bf16[256,256], index: 3, kind: input, shape index: {}]
  %s4 = inlined_call_operand.vmem [shape: f32[1,256], index: 4, kind: input, shape index: {}]
  %s5 = inlined_call_operand.hbm [shape: f32[256,256], index: 5, kind: output, shape index: {}]
  %s6 = sld [smem:[#allocation0]]
  $region65: #{tpu_custom_call.1} parent=0
    _
  %s8 = ssub.s32 1, %s6
  %s9 = scalar_select 0, %s8, %s6
  $region1: #{tpu_custom_call.1} parent=0
    #allocation2 [shape = 'u8[131072]{0}', space=vmem, size = 0x20000, scoped, tag = 'input window, operand 0']
    #allocation3 [shape = 's32[2]{0}', space=sflag, size = 0x8, scoped, tag = 'scoped memory for tpu_custom_call.1']
    #allocation4 [shape = 's32[2]{0}', space=sflag, size = 0x8, scoped, tag = 'scoped memory for tpu_custom_call.1']
    #allocation5 [shape = 'u8[131072]{0}', space=vmem, size = 0x20000, scoped, tag = 'input window, operand 1, single buffered']
    #allocation6 [shape = 's32[1]{0}', space=sflag, size = 0x4, scoped, tag = 'scoped memory for tpu_custom_call.1']
    #allocation7 [shape = 'u8[131072]{0}', space=vmem, size = 0x20000, scoped, tag = 'input window, operand 3, single buffered']
    #allocation8 [shape = 'u8[262144]{0}', space=vmem, size = 0x40000, scoped, tag = 'output window, operand 0']
    %10 = vsyncpa [#allocation3], 0
    %s11 = scalar_lea.sflag [#allocation3], 1
    %12 = vsyncpa %s11, 0
    %13 = vsyncpa [#allocation6], 0
    %14 = vsyncpa [#allocation4], 0
    %s15 = scalar_lea.sflag [#allocation4], 1
    %16 = vsyncpa %s15, 0
    loop: start=0, step=1, limit=4
    $region2: #{tpu_custom_call.1} parent=1 // loop_pre_header
      _
    $region3: #{tpu_custom_call.1} parent=1 // loop_header
      %s18 = sphi 0, %s22
      %p19 = scmp.ge.s32.totalorder %s18, 4
      %s28 = sphi 0, %s30
      %s31 = sphi 0, %s28
      %s32 = sphi 0, %s31
      %s48 = sphi 0, %s32
      %s52 = sphi 0, %s52
      %s54 = sphi 0, %s52
      %s55 = sphi 0, %s54
      %s69 = sphi 0, %s55
      %s73 = sphi 0, %s73
      %s75 = sphi 0, %s73
      %s76 = sphi 0, %s75
      %s90 = sphi 0, %s76
      %s94 = sphi 0, %s94
      %s96 = sphi 0, %s94
      %s97 = sphi 0, %s96
      %s111 = sphi 0, %s97
      %s115 = sphi 0, %s115
      %s117 = sphi 0, %s115
      %s118 = sphi 0, %s117
      %s132 = sphi 0, %s118
      %s138 = sphi 0, %s140
      %s141 = sphi 0, %s138
      %s142 = sphi 0, %s141
      %s158 = sphi 0, %s142
    $region4: #{tpu_custom_call.1} parent=1 // loop_header_branch
      %21 = sbr.rel (%p19) target = $region8
    $region5: #{tpu_custom_call.1} parent=1 // loop_body
      %s23 = ssub.s32 %s18, 1
      %s24 = ssub.s32 %s18, 2
      %s25 = sadd.s32 %s18, 1
      %s26 = ssub.s32 %s18, %s25
      %p27 = scmp.eq.s32.totalorder %s26, 0
      %s29 = sadd.s32 %s28, 1
      %s30 = scalar_select %p27, %s28, %s29
      %p33 = pneg %p27
      %p34 = scmp.eq.s32.totalorder %s18, 1
      %p35 = por %p33, %p34
      %p36 = scmp.ne.s32.totalorder %s28, %s31
      %p37 = scmp.eq.s32.totalorder %s18, 0
      %p38 = por %p36, %p37
      %p39 = scmp.ne.s32.totalorder %s28, %s31
      %p40 = scmp.eq.s32.totalorder %s23, 1
      %p41 = por %p39, %p40
      %p42 = scmp.ne.s32.totalorder %s31, %s32
      %p43 = scmp.eq.s32.totalorder %s23, 0
      %p44 = por %p42, %p43
      %p45 = scmp.ne.s32.totalorder %s31, %s32
      %p46 = scmp.eq.s32.totalorder %s24, 1
      %p47 = por %p45, %p46
      %p49 = scmp.ne.s32.totalorder %s32, %s48
      %p50 = scmp.eq.s32.totalorder %s24, 0
      %p51 = por %p49, %p50
      %s53 = sadd.s32 %s52, 1
      %p56 = scmp.eq.s32.totalorder %s18, 1
      %p57 = scmp.ne.s32.totalorder %s52, %s54
      %p58 = scmp.eq.s32.totalorder %s18, 0
      %p59 = por %p57, %p58
      %p60 = scmp.ne.s32.totalorder %s52, %s54
      %p61 = scmp.eq.s32.totalorder %s23, 1
      %p62 = por %p60, %p61
      %p63 = scmp.ne.s32.totalorder %s54, %s55
      %p64 = scmp.eq.s32.totalorder %s23, 0
      %p65 = por %p63, %p64
      %p66 = scmp.ne.s32.totalorder %s54, %s55
      %p67 = scmp.eq.s32.totalorder %s24, 1
      %p68 = por %p66, %p67
      %p70 = scmp.ne.s32.totalorder %s55, %s69
      %p71 = scmp.eq.s32.totalorder %s24, 0
      %p72 = por %p70, %p71
      %s74 = sadd.s32 %s73, 1
      %p77 = scmp.eq.s32.totalorder %s18, 1
      %p78 = scmp.ne.s32.totalorder %s73, %s75
      %p79 = scmp.eq.s32.totalorder %s18, 0
      %p80 = por %p78, %p79
      %p81 = scmp.ne.s32.totalorder %s73, %s75
      %p82 = scmp.eq.s32.totalorder %s23, 1
      %p83 = por %p81, %p82
      %p84 = scmp.ne.s32.totalorder %s75, %s76
      %p85 = scmp.eq.s32.totalorder %s23, 0
      %p86 = por %p84, %p85
      %p87 = scmp.ne.s32.totalorder %s75, %s76
      %p88 = scmp.eq.s32.totalorder %s24, 1
      %p89 = por %p87, %p88
      %p91 = scmp.ne.s32.totalorder %s76, %s90
      %p92 = scmp.eq.s32.totalorder %s24, 0
      %p93 = por %p91, %p92
      %s95 = sadd.s32 %s94, 1
      %p98 = scmp.eq.s32.totalorder %s18, 1
      %p99 = scmp.ne.s32.totalorder %s94, %s96
      %p100 = scmp.eq.s32.totalorder %s18, 0
      %p101 = por %p99, %p100
      %p102 = scmp.ne.s32.totalorder %s94, %s96
      %p103 = scmp.eq.s32.totalorder %s23, 1
      %p104 = por %p102, %p103
      %p105 = scmp.ne.s32.totalorder %s96, %s97
      %p106 = scmp.eq.s32.totalorder %s23, 0
      %p107 = por %p105, %p106
      %p108 = scmp.ne.s32.totalorder %s96, %s97
      %p109 = scmp.eq.s32.totalorder %s24, 1
      %p110 = por %p108, %p109
      %p112 = scmp.ne.s32.totalorder %s97, %s111
      %p113 = scmp.eq.s32.totalorder %s24, 0
      %p114 = por %p112, %p113
      %s116 = sadd.s32 %s115, 1
      %p119 = scmp.eq.s32.totalorder %s18, 1
      %p120 = scmp.ne.s32.totalorder %s115, %s117
      %p121 = scmp.eq.s32.totalorder %s18, 0
      %p122 = por %p120, %p121
      %p123 = scmp.ne.s32.totalorder %s115, %s117
      %p124 = scmp.eq.s32.totalorder %s23, 1
      %p125 = por %p123, %p124
      %p126 = scmp.ne.s32.totalorder %s117, %s118
      %p127 = scmp.eq.s32.totalorder %s23, 0
      %p128 = por %p126, %p127
      %p129 = scmp.ne.s32.totalorder %s117, %s118
      %p130 = scmp.eq.s32.totalorder %s24, 1
      %p131 = por %p129, %p130
      %p133 = scmp.ne.s32.totalorder %s118, %s132
      %p134 = scmp.eq.s32.totalorder %s24, 0
      %p135 = por %p133, %p134
      %s136 = ssub.s32 %s18, %s25
      %p137 = scmp.eq.s32.totalorder %s136, 0
      %s139 = sadd.s32 %s138, 1
      %s140 = scalar_select %p137, %s138, %s139
      %p143 = pneg %p137
      %p144 = scmp.eq.s32.totalorder %s18, 1
      %p145 = por %p143, %p144
      %p146 = scmp.ne.s32.totalorder %s138, %s141
      %p147 = scmp.eq.s32.totalorder %s18, 0
      %p148 = por %p146, %p147
      %p149 = scmp.ne.s32.totalorder %s138, %s141
      %p150 = scmp.eq.s32.totalorder %s23, 1
      %p151 = por %p149, %p150
      %p152 = scmp.ne.s32.totalorder %s141, %s142
      %p153 = scmp.eq.s32.totalorder %s23, 0
      %p154 = por %p152, %p153
      %p155 = scmp.ne.s32.totalorder %s141, %s142
      %p156 = scmp.eq.s32.totalorder %s24, 1
      %p157 = por %p155, %p156
      %p159 = scmp.ne.s32.totalorder %s142, %s158
      %p160 = scmp.eq.s32.totalorder %s24, 0
      %p161 = por %p159, %p160
      %p162 = scmp.le.s32.totalorder 1, %s18
      %p163 = scmp.lt.s32.totalorder %s18, 3
      %p164 = pnand %p162, %p163
      %p165 = pneg %p164
      // Predicated region
      $region9: #{tpu_custom_call.1} parent=5 // pred_check
        _
      $region10: #{tpu_custom_call.1} parent=5 // pred_check_branch
        %167 = sbr.rel (%p164) target = $region12
      $region11: #{tpu_custom_call.1} parent=5 // pred_region
        %s168 = ssub.s32 %s18, 1
        // Predicated region
        $region13: #{tpu_custom_call.1} parent=11 // pred_check
          %p169 = pneg %p65
        $region14: #{tpu_custom_call.1} parent=11 // pred_check_branch
          %171 = sbr.rel (%p169) target = $region16
        $region15: #{tpu_custom_call.1} parent=11 // pred_region
          %s173 = ssub.s32 4096, 4096
          %174 = vsyncadd [#allocation6], %s173
          %s175 = sshll.u32 [#allocation5], 4
          %s176 = int_to_ptr.vmem [resolvable:$true] %s175
          %181 = dma.hbm_to_vmem [thread:$0]  %s1, 4096, %s176, [#allocation6], 128, 128, 8
        $region16: #{tpu_custom_call.1} parent=11 // pred_fallthru
          _
        // Predicated region
        $region17: #{tpu_custom_call.1} parent=11 // pred_check
          %p182 = pneg %p86
        $region18: #{tpu_custom_call.1} parent=11 // pred_check_branch
          %184 = sbr.rel (%p182) target = $region20
        $region19: #{tpu_custom_call.1} parent=11 // pred_region
          _
        $region20: #{tpu_custom_call.1} parent=11 // pred_fallthru
          _
        // Predicated region
        $region21: #{tpu_custom_call.1} parent=11 // pred_check
          %p185 = pneg %p107
        $region22: #{tpu_custom_call.1} parent=11 // pred_check_branch
          %187 = sbr.rel (%p185) target = $region24
        $region23: #{tpu_custom_call.1} parent=11 // pred_region
          %s189 = ssub.s32 4096, 4096
          %190 = vsyncadd [#allocation6], %s189
          %s191 = sshll.u32 [#allocation7], 4
          %s192 = int_to_ptr.vmem [resolvable:$true] %s191
          %197 = dma.hbm_to_vmem [thread:$0]  %s3, 4096, %s192, [#allocation6], 128, 128, 8
        $region24: #{tpu_custom_call.1} parent=11 // pred_fallthru
          _
        // Predicated region
        $region25: #{tpu_custom_call.1} parent=11 // pred_check
          %p198 = pneg %p128
        $region26: #{tpu_custom_call.1} parent=11 // pred_check_branch
          %200 = sbr.rel (%p198) target = $region28
        $region27: #{tpu_custom_call.1} parent=11 // pred_region
          _
        $region28: #{tpu_custom_call.1} parent=11 // pred_fallthru
          _
      $region12: #{tpu_custom_call.1} parent=5 // pred_fallthru
        _
      %p201 = scmp.lt.s32.totalorder %s18, 2
      // Predicated region
      $region29: #{tpu_custom_call.1} parent=5 // pred_check
        %p202 = pneg %p201
      $region30: #{tpu_custom_call.1} parent=5 // pred_check_branch
        %204 = sbr.rel (%p202) target = $region32
      $region31: #{tpu_custom_call.1} parent=5 // pred_region
        // Predicated region
        $region33: #{tpu_custom_call.1} parent=31 // pred_check
          %p205 = pneg %p38
        $region34: #{tpu_custom_call.1} parent=31 // pred_check_branch
          %207 = sbr.rel (%p205) target = $region36
        $region35: #{tpu_custom_call.1} parent=31 // pred_region
          %s208 = sand.u32 %s28, 1
          %s209 = scalar_lea.sflag [#allocation3], %s208
          %s210 = sand.u32 %s28, 1
          %s211 = smul.addr %s210, 128
          %s212 = scalar_lea.vmem [#allocation2], %s211
          %s213 = smul.u32 16, %s18
          %s215 = ssub.s32 2048, 2048
          %216 = vsyncadd %s209, %s215
          %s217 = smul.addr %s213, 2
          %s218 = smul.addr %s217, 64
          %s219 = scalar_lea.hbm %s0, %s218
          %s220 = sshll.u32 %s212, 4
          %s221 = int_to_ptr.vmem [resolvable:$true] %s220
          %226 = dma.hbm_to_vmem [thread:$0]  %s219, 2048, %s221, %s209, 128, 128, 8
        $region36: #{tpu_custom_call.1} parent=31 // pred_fallthru
          _
      $region32: #{tpu_custom_call.1} parent=5 // pred_fallthru
        _
      %p227 = scmp.le.s32.totalorder 1, %s18
      %p228 = scmp.lt.s32.totalorder %s18, 3
      %p229 = pnand %p227, %p228
      %p230 = pneg %p229
      // Predicated region
      $region37: #{tpu_custom_call.1} parent=5 // pred_check
        _
      $region38: #{tpu_custom_call.1} parent=5 // pred_check_branch
        %232 = sbr.rel (%p229) target = $region40
      $region39: #{tpu_custom_call.1} parent=5 // pred_region
        %s233 = ssub.s32 %s18, 1
        %s234 = sand.u32 %s31, 1
        %s235 = scalar_lea.sflag [#allocation3], %s234
        %s236 = sand.u32 %s31, 1
        %s237 = smul.addr %s236, 128
        %s238 = scalar_lea.vmem [#allocation2], %s237
        // Predicated region
        $region41: #{tpu_custom_call.1} parent=39 // pred_check
          %p239 = pneg %p44
        $region42: #{tpu_custom_call.1} parent=39 // pred_check_branch
          %241 = sbr.rel (%p239) target = $region44
        $region43: #{tpu_custom_call.1} parent=39 // pred_region
          %242 = dma.done %s235, 2048
        $region44: #{tpu_custom_call.1} parent=39 // pred_fallthru
          _
        // Predicated region
        $region45: #{tpu_custom_call.1} parent=39 // pred_check
          %p243 = pneg %p65
        $region46: #{tpu_custom_call.1} parent=39 // pred_check_branch
          %245 = sbr.rel (%p243) target = $region48
        $region47: #{tpu_custom_call.1} parent=39 // pred_region
          %246 = dma.done [#allocation6], 4096
        $region48: #{tpu_custom_call.1} parent=39 // pred_fallthru
          _
        // Predicated region
        $region49: #{tpu_custom_call.1} parent=39 // pred_check
          %p247 = pneg %p107
        $region50: #{tpu_custom_call.1} parent=39 // pred_check_branch
          %249 = sbr.rel (%p247) target = $region52
        $region51: #{tpu_custom_call.1} parent=39 // pred_region
          %250 = dma.done [#allocation6], 4096
        $region52: #{tpu_custom_call.1} parent=39 // pred_fallthru
          _
        %s251 = sand.u32 %s31, 1
        %s252 = scalar_lea.sflag [#allocation3], %s251
        %s253 = sand.u32 %s31, 1
        %s254 = smul.addr %s253, 128
        %s255 = scalar_lea.vmem [#allocation2], %s254
        %p256 = pneg %p44
        %p257 = pneg %p41
        %p258 = pneg %p65
        %p259 = pneg %p62
        %p260 = pneg %p86
        %p261 = pneg %p83
        %p262 = pneg %p107
        %p263 = pneg %p104
        %p264 = pneg %p128
        %p265 = pneg %p125
        %p266 = pneg %p154
        %p267 = pneg %p151
        %s268 = sand.u32 %s141, 1
        %s269 = scalar_lea.sflag [#allocation4], %s268
        %s270 = sand.u32 %s141, 1
        %s271 = smul.addr %s270, 256
        %s272 = scalar_lea.vmem [#allocation8], %s271
        %s273 = smul.u32 16, %s23
        %s274 = smul.u32 16, %s23
        %v275 = vld [vmem:[%s238] sm:$0xff]
        %v276 = vld [vmem:[%s238 + $0x8] sm:$0xff]
        %v277 = vld [vmem:[%s238 + $0x10] sm:$0xff]
        %v278 = vld [vmem:[%s238 + $0x18] sm:$0xff]
        %v279 = vld [vmem:[%s238 + $0x20] sm:$0xff]
        %v280 = vld [vmem:[%s238 + $0x28] sm:$0xff]
        %v281 = vld [vmem:[%s238 + $0x30] sm:$0xff]
        %v282 = vld [vmem:[%s238 + $0x38] sm:$0xff]
        %v283 = vld [vmem:[%s238 + $0x40] sm:$0xff]
        %v284 = vld [vmem:[%s238 + $0x48] sm:$0xff]
        %v285 = vld [vmem:[%s238 + $0x50] sm:$0xff]
        %v286 = vld [vmem:[%s238 + $0x58] sm:$0xff]
        %v287 = vld [vmem:[%s238 + $0x60] sm:$0xff]
        %v288 = vld [vmem:[%s238 + $0x68] sm:$0xff]
        %v289 = vld [vmem:[%s238 + $0x70] sm:$0xff]
        %v290 = vld [vmem:[%s238 + $0x78] sm:$0xff]
        %v291 = vld [vmem:[%s2] sm:$0x3]
        %v292 = vld [vmem:[%s4] sm:$0x3]
        %v293 = vld [vmem:[#allocation5] sm:$0xff]
        %v294 = vld [vmem:[#allocation5 + $0x8] sm:$0xff]
        %v295 = vld [vmem:[#allocation5 + $0x10] sm:$0xff]
        %v296 = vld [vmem:[#allocation5 + $0x18] sm:$0xff]
        %v297 = vld [vmem:[#allocation5 + $0x20] sm:$0xff]
        %v298 = vld [vmem:[#allocation5 + $0x28] sm:$0xff]
        %v299 = vld [vmem:[#allocation5 + $0x30] sm:$0xff]
        %v300 = vld [vmem:[#allocation5 + $0x38] sm:$0xff]
        %v301 = vld [vmem:[#allocation5 + $0x40] sm:$0xff]
        %v302 = vld [vmem:[#allocation5 + $0x48] sm:$0xff]
        %v303 = vld [vmem:[#allocation5 + $0x50] sm:$0xff]
        %v304 = vld [vmem:[#allocation5 + $0x58] sm:$0xff]
        %v305 = vld [vmem:[#allocation5 + $0x60] sm:$0xff]
        %v306 = vld [vmem:[#allocation5 + $0x68] sm:$0xff]
        %v307 = vld [vmem:[#allocation5 + $0x70] sm:$0xff]
        %v308 = vld [vmem:[#allocation5 + $0x78] sm:$0xff]
        %v309 = vld [vmem:[#allocation5 + $0x80] sm:$0xff]
        %v310 = vld [vmem:[#allocation5 + $0x88] sm:$0xff]
        %v311 = vld [vmem:[#allocation5 + $0x90] sm:$0xff]
        %v312 = vld [vmem:[#allocation5 + $0x98] sm:$0xff]
        %v313 = vld [vmem:[#allocation5 + $0xa0] sm:$0xff]
        %v314 = vld [vmem:[#allocation5 + $0xa8] sm:$0xff]
        %v315 = vld [vmem:[#allocation5 + $0xb0] sm:$0xff]
        %v316 = vld [vmem:[#allocation5 + $0xb8] sm:$0xff]
        %v317 = vld [vmem:[#allocation5 + $0xc0] sm:$0xff]
        %v318 = vld [vmem:[#allocation5 + $0xc8] sm:$0xff]
        %v319 = vld [vmem:[#allocation5 + $0xd0] sm:$0xff]
        %v320 = vld [vmem:[#allocation5 + $0xd8] sm:$0xff]
        %v321 = vld [vmem:[#allocation5 + $0xe0] sm:$0xff]
        %v322 = vld [vmem:[#allocation5 + $0xe8] sm:$0xff]
        %v323 = vld [vmem:[#allocation5 + $0xf0] sm:$0xff]
        %v324 = vld [vmem:[#allocation5 + $0xf8] sm:$0xff]
        %v326 = vlaneseq
        %v327 = vshrl.u32 %v326, 7
        %v328 = vsub.s32 0, %v327
        %v329 = vrot.slane %v291, %v328
        %v330 = vlaneseq
        %v331 = vshrl.u32 %v330, 7
        %v332 = vsub.s32 1, %v331
        %v333 = vrot.slane %v291, %v332
        %v352 = vunpack.c.l.b16 %v275
        %v353 = vunpack.c.h.b16 %v275
        %v354 = vunpack.c.l.b16 %v276
        %v355 = vunpack.c.h.b16 %v276
        %v356 = vunpack.c.l.b16 %v277
        %v357 = vunpack.c.h.b16 %v277
        %v358 = vunpack.c.l.b16 %v278
        %v359 = vunpack.c.h.b16 %v278
        %v360 = vunpack.c.l.b16 %v279
        %v361 = vunpack.c.h.b16 %v279
        %v362 = vunpack.c.l.b16 %v280
        %v363 = vunpack.c.h.b16 %v280
        %v364 = vunpack.c.l.b16 %v281
        %v365 = vunpack.c.h.b16 %v281
        %v366 = vunpack.c.l.b16 %v282
        %v367 = vunpack.c.h.b16 %v282
        %v368 = vunpack.c.l.b16 %v283
        %v369 = vunpack.c.h.b16 %v283
        %v370 = vunpack.c.l.b16 %v284
        %v371 = vunpack.c.h.b16 %v284
        %v372 = vunpack.c.l.b16 %v285
        %v373 = vunpack.c.h.b16 %v285
        %v374 = vunpack.c.l.b16 %v286
        %v375 = vunpack.c.h.b16 %v286
        %v376 = vunpack.c.l.b16 %v287
        %v377 = vunpack.c.h.b16 %v287
        %v378 = vunpack.c.l.b16 %v288
        %v379 = vunpack.c.h.b16 %v288
        %v380 = vunpack.c.l.b16 %v289
        %v381 = vunpack.c.h.b16 %v289
        %v382 = vunpack.c.l.b16 %v290
        %v383 = vunpack.c.h.b16 %v290
        %v384 = vpack.c.b16 %v354, %v352
        %v385 = vpack.c.b16 %v355, %v353
        %v386 = vpack.c.b16 %v358, %v356
        %v387 = vpack.c.b16 %v359, %v357
        %v388 = vpack.c.b16 %v362, %v360
        %v389 = vpack.c.b16 %v363, %v361
        %v390 = vpack.c.b16 %v366, %v364
        %v391 = vpack.c.b16 %v367, %v365
        %v392 = vpack.c.b16 %v370, %v368
        %v393 = vpack.c.b16 %v371, %v369
        %v394 = vpack.c.b16 %v374, %v372
        %v395 = vpack.c.b16 %v375, %v373
        %v396 = vpack.c.b16 %v378, %v376
        %v397 = vpack.c.b16 %v379, %v377
        %v398 = vpack.c.b16 %v382, %v380
        %v399 = vpack.c.b16 %v383, %v381
        %v448 = vunpack.c.l.b16 %v293
        %v449 = vunpack.c.h.b16 %v293
        %v450 = vunpack.c.l.b16 %v294
        %v451 = vunpack.c.h.b16 %v294
        %v452 = vunpack.c.l.b16 %v295
        %v453 = vunpack.c.h.b16 %v295
        %v454 = vunpack.c.l.b16 %v296
        %v455 = vunpack.c.h.b16 %v296
        %v456 = vunpack.c.l.b16 %v297
        %v457 = vunpack.c.h.b16 %v297
        %v458 = vunpack.c.l.b16 %v298
        %v459 = vunpack.c.h.b16 %v298
        %v460 = vunpack.c.l.b16 %v299
        %v461 = vunpack.c.h.b16 %v299
        %v462 = vunpack.c.l.b16 %v300
        %v463 = vunpack.c.h.b16 %v300
        %v464 = vunpack.c.l.b16 %v301
        %v465 = vunpack.c.h.b16 %v301
        %v466 = vunpack.c.l.b16 %v302
        %v467 = vunpack.c.h.b16 %v302
        %v468 = vunpack.c.l.b16 %v303
        %v469 = vunpack.c.h.b16 %v303
        %v470 = vunpack.c.l.b16 %v304
        %v471 = vunpack.c.h.b16 %v304
        %v472 = vunpack.c.l.b16 %v305
        %v473 = vunpack.c.h.b16 %v305
        %v474 = vunpack.c.l.b16 %v306
        %v475 = vunpack.c.h.b16 %v306
        %v476 = vunpack.c.l.b16 %v307
        %v477 = vunpack.c.h.b16 %v307
        %v478 = vunpack.c.l.b16 %v308
        %v479 = vunpack.c.h.b16 %v308
        %v480 = vunpack.c.l.b16 %v309
        %v481 = vunpack.c.h.b16 %v309
        %v482 = vunpack.c.l.b16 %v310
        %v483 = vunpack.c.h.b16 %v310
        %v484 = vunpack.c.l.b16 %v311
        %v485 = vunpack.c.h.b16 %v311
        %v486 = vunpack.c.l.b16 %v312
        %v487 = vunpack.c.h.b16 %v312
        %v488 = vunpack.c.l.b16 %v313
        %v489 = vunpack.c.h.b16 %v313
        %v490 = vunpack.c.l.b16 %v314
        %v491 = vunpack.c.h.b16 %v314
        %v492 = vunpack.c.l.b16 %v315
        %v493 = vunpack.c.h.b16 %v315
        %v494 = vunpack.c.l.b16 %v316
        %v495 = vunpack.c.h.b16 %v316
        %v496 = vunpack.c.l.b16 %v317
        %v497 = vunpack.c.h.b16 %v317
        %v498 = vunpack.c.l.b16 %v318
        %v499 = vunpack.c.h.b16 %v318
        %v500 = vunpack.c.l.b16 %v319
        %v501 = vunpack.c.h.b16 %v319
        %v502 = vunpack.c.l.b16 %v320
        %v503 = vunpack.c.h.b16 %v320
        %v504 = vunpack.c.l.b16 %v321
        %v505 = vunpack.c.h.b16 %v321
        %v506 = vunpack.c.l.b16 %v322
        %v507 = vunpack.c.h.b16 %v322
        %v508 = vunpack.c.l.b16 %v323
        %v509 = vunpack.c.h.b16 %v323
        %v510 = vunpack.c.l.b16 %v324
        %v511 = vunpack.c.h.b16 %v324
        %v512 = vpack.c.b16 %v450, %v448
        %v513 = vpack.c.b16 %v451, %v449
        %v514 = vpack.c.b16 %v454, %v452
        %v515 = vpack.c.b16 %v455, %v453
        %v516 = vpack.c.b16 %v458, %v456
        %v517 = vpack.c.b16 %v459, %v457
        %v518 = vpack.c.b16 %v462, %v460
        %v519 = vpack.c.b16 %v463, %v461
        %v520 = vpack.c.b16 %v466, %v464
        %v521 = vpack.c.b16 %v467, %v465
        %v522 = vpack.c.b16 %v470, %v468
        %v523 = vpack.c.b16 %v471, %v469
        %v524 = vpack.c.b16 %v474, %v472
        %v525 = vpack.c.b16 %v475, %v473
        %v526 = vpack.c.b16 %v478, %v476
        %v527 = vpack.c.b16 %v479, %v477
        %v528 = vpack.c.b16 %v482, %v480
        %v529 = vpack.c.b16 %v483, %v481
        %v530 = vpack.c.b16 %v486, %v484
        %v531 = vpack.c.b16 %v487, %v485
        %v532 = vpack.c.b16 %v490, %v488
        %v533 = vpack.c.b16 %v491, %v489
        %v534 = vpack.c.b16 %v494, %v492
        %v535 = vpack.c.b16 %v495, %v493
        %v536 = vpack.c.b16 %v498, %v496
        %v537 = vpack.c.b16 %v499, %v497
        %v538 = vpack.c.b16 %v502, %v500
        %v539 = vpack.c.b16 %v503, %v501
        %v540 = vpack.c.b16 %v506, %v504
        %v541 = vpack.c.b16 %v507, %v505
        %v542 = vpack.c.b16 %v510, %v508
        %v543 = vpack.c.b16 %v511, %v509
        %576 = vmatprep.subr.bf16.mxu0 %v513
        %577 = vmatpush1.bf16.msra.mxu0 %v512
        %578 = vmatprep.subr.bf16.mxu0 %v515
        %579 = vmatpush1.bf16.msra.mxu0 %v514
        %580 = vmatprep.subr.bf16.mxu0 %v517
        %581 = vmatpush1.bf16.msra.mxu0 %v516
        %582 = vmatprep.subr.bf16.mxu0 %v519
        %583 = vmatpush1.bf16.msra.mxu0 %v518
        %584 = vmatprep.subr.bf16.mxu0 %v521
        %585 = vmatpush1.bf16.msra.mxu0 %v520
        %586 = vmatprep.subr.bf16.mxu0 %v523
        %587 = vmatpush1.bf16.msra.mxu0 %v522
        %588 = vmatprep.subr.bf16.mxu0 %v525
        %589 = vmatpush1.bf16.msra.mxu0 %v524
        %590 = vmatprep.subr.bf16.mxu0 %v527
        %591 = vmatpush1.bf16.msra.mxu0 %v526
        %592 = vmatprep.subr.bf16.mxu0 %v529
        %593 = vmatpush1.bf16.msra.mxu0 %v528
        %594 = vmatprep.subr.bf16.mxu0 %v531
        %595 = vmatpush1.bf16.msra.mxu0 %v530
        %596 = vmatprep.subr.bf16.mxu0 %v533
        %597 = vmatpush1.bf16.msra.mxu0 %v532
        %598 = vmatprep.subr.bf16.mxu0 %v535
        %599 = vmatpush1.bf16.msra.mxu0 %v534
        %600 = vmatprep.subr.bf16.mxu0 %v537
        %601 = vmatpush1.bf16.msra.mxu0 %v536
        %602 = vmatprep.subr.bf16.mxu0 %v539
        %603 = vmatpush1.bf16.msra.mxu0 %v538
        %604 = vmatprep.subr.bf16.mxu0 %v541
        %605 = vmatpush1.bf16.msra.mxu0 %v540
        %606 = vmatprep.subr.bf16.mxu0 %v543
        %607 = vmatpush1.bf16.msra.mxu0 %v542
        %608 = vmatprep.mubr.bf16.mxu0 %v385
        %609 = vmatmul.mubr.bf16.gmra.mrb[0].mxu0 %v384
        %v610 = vpop.f32.mrb[0].mxu0
        %v611 = vadd.f32 %v329, %v610
        %v612 = vpop.f32.mrb[0].mxu0
        %v613 = vadd.f32 %v333, %v612
        %v614 = vpop.f32.mrb[0].mxu0
        %v615 = vadd.f32 %v329, %v614
        %v616 = vpop.f32.mrb[0].mxu0
        %v617 = vadd.f32 %v333, %v616
        %618 = vmatprep.mubr.bf16.mxu0 %v387
        %619 = vmatmul.mubr.bf16.gmra.mrb[0].mxu0 %v386
        %v620 = vpop.f32.mrb[0].mxu0
        %v621 = vadd.f32 %v329, %v620
        %v622 = vpop.f32.mrb[0].mxu0
        %v623 = vadd.f32 %v333, %v622
        %v624 = vpop.f32.mrb[0].mxu0
        %v625 = vadd.f32 %v329, %v624
        %v626 = vpop.f32.mrb[0].mxu0
        %v627 = vadd.f32 %v333, %v626
        %628 = vmatprep.mubr.bf16.mxu0 %v389
        %629 = vmatmul.mubr.bf16.gmra.mrb[0].mxu0 %v388
        %v630 = vpop.f32.mrb[0].mxu0
        %v631 = vadd.f32 %v329, %v630
        %v632 = vpop.f32.mrb[0].mxu0
        %v633 = vadd.f32 %v333, %v632
        %v634 = vpop.f32.mrb[0].mxu0
        %v635 = vadd.f32 %v329, %v634
        %v636 = vpop.f32.mrb[0].mxu0
        %v637 = vadd.f32 %v333, %v636
        %638 = vmatprep.mubr.bf16.mxu0 %v391
        %639 = vmatmul.mubr.bf16.gmra.mrb[0].mxu0 %v390
        %v640 = vpop.f32.mrb[0].mxu0
        %v641 = vadd.f32 %v329, %v640
        %v642 = vpop.f32.mrb[0].mxu0
        %v643 = vadd.f32 %v333, %v642
        %v644 = vpop.f32.mrb[0].mxu0
        %v645 = vadd.f32 %v329, %v644
        %v646 = vpop.f32.mrb[0].mxu0
        %v647 = vadd.f32 %v333, %v646
        %648 = vmatprep.mubr.bf16.mxu0 %v393
        %649 = vmatmul.mubr.bf16.gmra.mrb[0].mxu0 %v392
        %v650 = vpop.f32.mrb[0].mxu0
        %v651 = vadd.f32 %v329, %v650
        %v652 = vpop.f32.mrb[0].mxu0
        %v653 = vadd.f32 %v333, %v652
        %v654 = vpop.f32.mrb[0].mxu0
        %v655 = vadd.f32 %v329, %v654
        %v656 = vpop.f32.mrb[0].mxu0
        %v657 = vadd.f32 %v333, %v656
        %658 = vmatprep.mubr.bf16.mxu0 %v395
        %659 = vmatmul.mubr.bf16.gmra.mrb[0].mxu0 %v394
        %v660 = vpop.f32.mrb[0].mxu0
        %v661 = vadd.f32 %v329, %v660
        %v662 = vpop.f32.mrb[0].mxu0
        %v663 = vadd.f32 %v333, %v662
        %v664 = vpop.f32.mrb[0].mxu0
        %v665 = vadd.f32 %v329, %v664
        %v666 = vpop.f32.mrb[0].mxu0
        %v667 = vadd.f32 %v333, %v666
        %668 = vmatprep.mubr.bf16.mxu0 %v397
        %669 = vmatmul.mubr.bf16.gmra.mrb[0].mxu0 %v396
        %v670 = vpop.f32.mrb[0].mxu0
        %v671 = vadd.f32 %v329, %v670
        %v672 = vpop.f32.mrb[0].mxu0
        %v673 = vadd.f32 %v333, %v672
        %v674 = vpop.f32.mrb[0].mxu0
        %v675 = vadd.f32 %v329, %v674
        %v676 = vpop.f32.mrb[0].mxu0
        %v677 = vadd.f32 %v333, %v676
        %678 = vmatprep.mubr.bf16.mxu0 %v399
        %679 = vmatmul.mubr.bf16.gmra.mrb[0].mxu0 %v398
        %v680 = vpop.f32.mrb[0].mxu0
        %v681 = vadd.f32 %v329, %v680
        %v682 = vpop.f32.mrb[0].mxu0
        %v683 = vadd.f32 %v333, %v682
        %v684 = vpop.f32.mrb[0].mxu0
        %v685 = vadd.f32 %v329, %v684
        %v686 = vpop.f32.mrb[0].mxu0
        %v687 = vadd.f32 %v333, %v686
        %688 = vdwg.mxu0
        %v689 = vpack.c.bf16 %v615, %v611
        %v690 = vpack.c.bf16 %v617, %v613
        %v691 = vpack.c.bf16 %v625, %v621
        %v692 = vpack.c.bf16 %v627, %v623
        %v693 = vpack.c.bf16 %v635, %v631
        %v694 = vpack.c.bf16 %v637, %v633
        %v695 = vpack.c.bf16 %v645, %v641
        %v696 = vpack.c.bf16 %v647, %v643
        %v697 = vpack.c.bf16 %v655, %v651
        %v698 = vpack.c.bf16 %v657, %v653
        %v699 = vpack.c.bf16 %v665, %v661
        %v700 = vpack.c.bf16 %v667, %v663
        %v701 = vpack.c.bf16 %v675, %v671
        %v702 = vpack.c.bf16 %v677, %v673
        %v703 = vpack.c.bf16 %v685, %v681
        %v704 = vpack.c.bf16 %v687, %v683
        %v705 = vld [vmem:[#allocation7] sm:$0xff]
        %v706 = vld [vmem:[#allocation7 + $0x8] sm:$0xff]
        %v707 = vld [vmem:[#allocation7 + $0x10] sm:$0xff]
        %v708 = vld [vmem:[#allocation7 + $0x18] sm:$0xff]
        %v709 = vld [vmem:[#allocation7 + $0x20] sm:$0xff]
        %v710 = vld [vmem:[#allocation7 + $0x28] sm:$0xff]
        %v711 = vld [vmem:[#allocation7 + $0x30] sm:$0xff]
        %v712 = vld [vmem:[#allocation7 + $0x38] sm:$0xff]
        %v713 = vld [vmem:[#allocation7 + $0x40] sm:$0xff]
        %v714 = vld [vmem:[#allocation7 + $0x48] sm:$0xff]
        %v715 = vld [vmem:[#allocation7 + $0x50] sm:$0xff]
        %v716 = vld [vmem:[#allocation7 + $0x58] sm:$0xff]
        %v717 = vld [vmem:[#allocation7 + $0x60] sm:$0xff]
        %v718 = vld [vmem:[#allocation7 + $0x68] sm:$0xff]
        %v719 = vld [vmem:[#allocation7 + $0x70] sm:$0xff]
        %v720 = vld [vmem:[#allocation7 + $0x78] sm:$0xff]
        %v721 = vld [vmem:[#allocation7 + $0x80] sm:$0xff]
        %v722 = vld [vmem:[#allocation7 + $0x88] sm:$0xff]
        %v723 = vld [vmem:[#allocation7 + $0x90] sm:$0xff]
        %v724 = vld [vmem:[#allocation7 + $0x98] sm:$0xff]
        %v725 = vld [vmem:[#allocation7 + $0xa0] sm:$0xff]
        %v726 = vld [vmem:[#allocation7 + $0xa8] sm:$0xff]
        %v727 = vld [vmem:[#allocation7 + $0xb0] sm:$0xff]
        %v728 = vld [vmem:[#allocation7 + $0xb8] sm:$0xff]
        %v729 = vld [vmem:[#allocation7 + $0xc0] sm:$0xff]
        %v730 = vld [vmem:[#allocation7 + $0xc8] sm:$0xff]
        %v731 = vld [vmem:[#allocation7 + $0xd0] sm:$0xff]
        %v732 = vld [vmem:[#allocation7 + $0xd8] sm:$0xff]
        %v733 = vld [vmem:[#allocation7 + $0xe0] sm:$0xff]
        %v734 = vld [vmem:[#allocation7 + $0xe8] sm:$0xff]
        %v735 = vld [vmem:[#allocation7 + $0xf0] sm:$0xff]
        %v736 = vld [vmem:[#allocation7 + $0xf8] sm:$0xff]
        %v738 = vlaneseq
        %v739 = vshrl.u32 %v738, 7
        %v740 = vsub.s32 0, %v739
        %v741 = vrot.slane %v292, %v740
        %v742 = vlaneseq
        %v743 = vshrl.u32 %v742, 7
        %v744 = vsub.s32 1, %v743
        %v745 = vrot.slane %v292, %v744
        %v780 = vunpack.c.l.b16 %v705
        %v781 = vunpack.c.h.b16 %v705
        %v782 = vunpack.c.l.b16 %v706
        %v783 = vunpack.c.h.b16 %v706
        %v784 = vunpack.c.l.b16 %v707
        %v785 = vunpack.c.h.b16 %v707
        %v786 = vunpack.c.l.b16 %v708
        %v787 = vunpack.c.h.b16 %v708
        %v788 = vunpack.c.l.b16 %v709
        %v789 = vunpack.c.h.b16 %v709
        %v790 = vunpack.c.l.b16 %v710
        %v791 = vunpack.c.h.b16 %v710
        %v792 = vunpack.c.l.b16 %v711
        %v793 = vunpack.c.h.b16 %v711
        %v794 = vunpack.c.l.b16 %v712
        %v795 = vunpack.c.h.b16 %v712
        %v796 = vunpack.c.l.b16 %v713
        %v797 = vunpack.c.h.b16 %v713
        %v798 = vunpack.c.l.b16 %v714
        %v799 = vunpack.c.h.b16 %v714
        %v800 = vunpack.c.l.b16 %v715
        %v801 = vunpack.c.h.b16 %v715
        %v802 = vunpack.c.l.b16 %v716
        %v803 = vunpack.c.h.b16 %v716
        %v804 = vunpack.c.l.b16 %v717
        %v805 = vunpack.c.h.b16 %v717
        %v806 = vunpack.c.l.b16 %v718
        %v807 = vunpack.c.h.b16 %v718
        %v808 = vunpack.c.l.b16 %v719
        %v809 = vunpack.c.h.b16 %v719
        %v810 = vunpack.c.l.b16 %v720
        %v811 = vunpack.c.h.b16 %v720
        %v812 = vunpack.c.l.b16 %v721
        %v813 = vunpack.c.h.b16 %v721
        %v814 = vunpack.c.l.b16 %v722
        %v815 = vunpack.c.h.b16 %v722
        %v816 = vunpack.c.l.b16 %v723
        %v817 = vunpack.c.h.b16 %v723
        %v818 = vunpack.c.l.b16 %v724
        %v819 = vunpack.c.h.b16 %v724
        %v820 = vunpack.c.l.b16 %v725
        %v821 = vunpack.c.h.b16 %v725
        %v822 = vunpack.c.l.b16 %v726
        %v823 = vunpack.c.h.b16 %v726
        %v824 = vunpack.c.l.b16 %v727
        %v825 = vunpack.c.h.b16 %v727
        %v826 = vunpack.c.l.b16 %v728
        %v827 = vunpack.c.h.b16 %v728
        %v828 = vunpack.c.l.b16 %v729
        %v829 = vunpack.c.h.b16 %v729
        %v830 = vunpack.c.l.b16 %v730
        %v831 = vunpack.c.h.b16 %v730
        %v832 = vunpack.c.l.b16 %v731
        %v833 = vunpack.c.h.b16 %v731
        %v834 = vunpack.c.l.b16 %v732
        %v835 = vunpack.c.h.b16 %v732
        %v836 = vunpack.c.l.b16 %v733
        %v837 = vunpack.c.h.b16 %v733
        %v838 = vunpack.c.l.b16 %v734
        %v839 = vunpack.c.h.b16 %v734
        %v840 = vunpack.c.l.b16 %v735
        %v841 = vunpack.c.h.b16 %v735
        %v842 = vunpack.c.l.b16 %v736
        %v843 = vunpack.c.h.b16 %v736
        %v844 = vpack.c.b16 %v782, %v780
        %v845 = vpack.c.b16 %v783, %v781
        %v846 = vpack.c.b16 %v786, %v784
        %v847 = vpack.c.b16 %v787, %v785
        %v848 = vpack.c.b16 %v790, %v788
        %v849 = vpack.c.b16 %v791, %v789
        %v850 = vpack.c.b16 %v794, %v792
        %v851 = vpack.c.b16 %v795, %v793
        %v852 = vpack.c.b16 %v798, %v796
        %v853 = vpack.c.b16 %v799, %v797
        %v854 = vpack.c.b16 %v802, %v800
        %v855 = vpack.c.b16 %v803, %v801
        %v856 = vpack.c.b16 %v806, %v804
        %v857 = vpack.c.b16 %v807, %v805
        %v858 = vpack.c.b16 %v810, %v808
        %v859 = vpack.c.b16 %v811, %v809
        %v860 = vpack.c.b16 %v814, %v812
        %v861 = vpack.c.b16 %v815, %v813
        %v862 = vpack.c.b16 %v818, %v816
        %v863 = vpack.c.b16 %v819, %v817
        %v864 = vpack.c.b16 %v822, %v820
        %v865 = vpack.c.b16 %v823, %v821
        %v866 = vpack.c.b16 %v826, %v824
        %v867 = vpack.c.b16 %v827, %v825
        %v868 = vpack.c.b16 %v830, %v828
        %v869 = vpack.c.b16 %v831, %v829
        %v870 = vpack.c.b16 %v834, %v832
        %v871 = vpack.c.b16 %v835, %v833
        %v872 = vpack.c.b16 %v838, %v836
        %v873 = vpack.c.b16 %v839, %v837
        %v874 = vpack.c.b16 %v842, %v840
        %v875 = vpack.c.b16 %v843, %v841
        %908 = vmatprep.subr.bf16.mxu0 %v845
        %909 = vmatpush1.bf16.msra.mxu0 %v844
        %910 = vmatprep.subr.bf16.mxu0 %v847
        %911 = vmatpush1.bf16.msra.mxu0 %v846
        %912 = vmatprep.subr.bf16.mxu0 %v849
        %913 = vmatpush1.bf16.msra.mxu0 %v848
        %914 = vmatprep.subr.bf16.mxu0 %v851
        %915 = vmatpush1.bf16.msra.mxu0 %v850
        %916 = vmatprep.subr.bf16.mxu0 %v853
        %917 = vmatpush1.bf16.msra.mxu0 %v852
        %918 = vmatprep.subr.bf16.mxu0 %v855
        %919 = vmatpush1.bf16.msra.mxu0 %v854
        %920 = vmatprep.subr.bf16.mxu0 %v857
        %921 = vmatpush1.bf16.msra.mxu0 %v856
        %922 = vmatprep.subr.bf16.mxu0 %v859
        %923 = vmatpush1.bf16.msra.mxu0 %v858
        %924 = vmatprep.subr.bf16.mxu0 %v861
        %925 = vmatpush1.bf16.msra.mxu0 %v860
        %926 = vmatprep.subr.bf16.mxu0 %v863
        %927 = vmatpush1.bf16.msra.mxu0 %v862
        %928 = vmatprep.subr.bf16.mxu0 %v865
        %929 = vmatpush1.bf16.msra.mxu0 %v864
        %930 = vmatprep.subr.bf16.mxu0 %v867
        %931 = vmatpush1.bf16.msra.mxu0 %v866
        %932 = vmatprep.subr.bf16.mxu0 %v869
        %933 = vmatpush1.bf16.msra.mxu0 %v868
        %934 = vmatprep.subr.bf16.mxu0 %v871
        %935 = vmatpush1.bf16.msra.mxu0 %v870
        %936 = vmatprep.subr.bf16.mxu0 %v873
        %937 = vmatpush1.bf16.msra.mxu0 %v872
        %938 = vmatprep.subr.bf16.mxu0 %v875
        %939 = vmatpush1.bf16.msra.mxu0 %v874
        %940 = vmatprep.mubr.bf16.mxu0 %v690
        %941 = vmatmul.mubr.bf16.gmra.mrb[0].mxu0 %v689
        %v942 = vpop.f32.mrb[0].mxu0
        %v943 = vadd.f32 %v741, %v942
        %v944 = vpop.f32.mrb[0].mxu0
        %v945 = vadd.f32 %v745, %v944
        %v946 = vpop.f32.mrb[0].mxu0
        %v947 = vadd.f32 %v741, %v946
        %v948 = vpop.f32.mrb[0].mxu0
        %v949 = vadd.f32 %v745, %v948
        %950 = vmatprep.mubr.bf16.mxu0 %v692
        %951 = vmatmul.mubr.bf16.gmra.mrb[0].mxu0 %v691
        %v952 = vpop.f32.mrb[0].mxu0
        %v953 = vadd.f32 %v741, %v952
        %v954 = vpop.f32.mrb[0].mxu0
        %v955 = vadd.f32 %v745, %v954
        %v956 = vpop.f32.mrb[0].mxu0
        %v957 = vadd.f32 %v741, %v956
        %v958 = vpop.f32.mrb[0].mxu0
        %v959 = vadd.f32 %v745, %v958
        %960 = vmatprep.mubr.bf16.mxu0 %v694
        %961 = vmatmul.mubr.bf16.gmra.mrb[0].mxu0 %v693
        %v962 = vpop.f32.mrb[0].mxu0
        %v963 = vadd.f32 %v741, %v962
        %v964 = vpop.f32.mrb[0].mxu0
        %v965 = vadd.f32 %v745, %v964
        %v966 = vpop.f32.mrb[0].mxu0
        %v967 = vadd.f32 %v741, %v966
        %v968 = vpop.f32.mrb[0].mxu0
        %v969 = vadd.f32 %v745, %v968
        %970 = vmatprep.mubr.bf16.mxu0 %v696
        %971 = vmatmul.mubr.bf16.gmra.mrb[0].mxu0 %v695
        %v972 = vpop.f32.mrb[0].mxu0
        %v973 = vadd.f32 %v741, %v972
        %v974 = vpop.f32.mrb[0].mxu0
        %v975 = vadd.f32 %v745, %v974
        %v976 = vpop.f32.mrb[0].mxu0
        %v977 = vadd.f32 %v741, %v976
        %v978 = vpop.f32.mrb[0].mxu0
        %v979 = vadd.f32 %v745, %v978
        %980 = vmatprep.mubr.bf16.mxu0 %v698
        %981 = vmatmul.mubr.bf16.gmra.mrb[0].mxu0 %v697
        %v982 = vpop.f32.mrb[0].mxu0
        %v983 = vadd.f32 %v741, %v982
        %v984 = vpop.f32.mrb[0].mxu0
        %v985 = vadd.f32 %v745, %v984
        %v986 = vpop.f32.mrb[0].mxu0
        %v987 = vadd.f32 %v741, %v986
        %v988 = vpop.f32.mrb[0].mxu0
        %v989 = vadd.f32 %v745, %v988
        %990 = vmatprep.mubr.bf16.mxu0 %v700
        %991 = vmatmul.mubr.bf16.gmra.mrb[0].mxu0 %v699
        %v992 = vpop.f32.mrb[0].mxu0
        %v993 = vadd.f32 %v741, %v992
        %v994 = vpop.f32.mrb[0].mxu0
        %v995 = vadd.f32 %v745, %v994
        %v996 = vpop.f32.mrb[0].mxu0
        %v997 = vadd.f32 %v741, %v996
        %v998 = vpop.f32.mrb[0].mxu0
        %v999 = vadd.f32 %v745, %v998
        %1000 = vmatprep.mubr.bf16.mxu0 %v702
        %1001 = vmatmul.mubr.bf16.gmra.mrb[0].mxu0 %v701
        %v1002 = vpop.f32.mrb[0].mxu0
        %v1003 = vadd.f32 %v741, %v1002
        %v1004 = vpop.f32.mrb[0].mxu0
        %v1005 = vadd.f32 %v745, %v1004
        %v1006 = vpop.f32.mrb[0].mxu0
        %v1007 = vadd.f32 %v741, %v1006
        %v1008 = vpop.f32.mrb[0].mxu0
        %v1009 = vadd.f32 %v745, %v1008
        %1010 = vmatprep.mubr.bf16.mxu0 %v704
        %1011 = vmatmul.mubr.bf16.gmra.mrb[0].mxu0 %v703
        %v1012 = vpop.f32.mrb[0].mxu0
        %v1013 = vadd.f32 %v741, %v1012
        %v1014 = vpop.f32.mrb[0].mxu0
        %v1015 = vadd.f32 %v745, %v1014
        %v1016 = vpop.f32.mrb[0].mxu0
        %v1017 = vadd.f32 %v741, %v1016
        %v1018 = vpop.f32.mrb[0].mxu0
        %v1019 = vadd.f32 %v745, %v1018
        %1020 = vdwg.mxu0
        %v1021 = vadd.f32 %v611, %v943
        %v1022 = vadd.f32 %v613, %v945
        %v1023 = vadd.f32 %v615, %v947
        %v1024 = vadd.f32 %v617, %v949
        %v1025 = vadd.f32 %v621, %v953
        %v1026 = vadd.f32 %v623, %v955
        %v1027 = vadd.f32 %v625, %v957
        %v1028 = vadd.f32 %v627, %v959
        %v1029 = vadd.f32 %v631, %v963
        %v1030 = vadd.f32 %v633, %v965
        %v1031 = vadd.f32 %v635, %v967
        %v1032 = vadd.f32 %v637, %v969
        %v1033 = vadd.f32 %v641, %v973
        %v1034 = vadd.f32 %v643, %v975
        %v1035 = vadd.f32 %v645, %v977
        %v1036 = vadd.f32 %v647, %v979
        %v1037 = vadd.f32 %v651, %v983
        %v1038 = vadd.f32 %v653, %v985
        %v1039 = vadd.f32 %v655, %v987
        %v1040 = vadd.f32 %v657, %v989
        %v1041 = vadd.f32 %v661, %v993
        %v1042 = vadd.f32 %v663, %v995
        %v1043 = vadd.f32 %v665, %v997
        %v1044 = vadd.f32 %v667, %v999
        %v1045 = vadd.f32 %v671, %v1003
        %v1046 = vadd.f32 %v673, %v1005
        %v1047 = vadd.f32 %v675, %v1007
        %v1048 = vadd.f32 %v677, %v1009
        %v1049 = vadd.f32 %v681, %v1013
        %v1050 = vadd.f32 %v683, %v1015
        %v1051 = vadd.f32 %v685, %v1017
        %v1052 = vadd.f32 %v687, %v1019
        %1053 = vst [vmem:[%s272] sm:$0xff] %v1021
        %1054 = vst [vmem:[%s272 + $0x8] sm:$0xff] %v1022
        %1055 = vst [vmem:[%s272 + $0x10] sm:$0xff] %v1023
        %1056 = vst [vmem:[%s272 + $0x18] sm:$0xff] %v1024
        %1057 = vst [vmem:[%s272 + $0x20] sm:$0xff] %v1025
        %1058 = vst [vmem:[%s272 + $0x28] sm:$0xff] %v1026
        %1059 = vst [vmem:[%s272 + $0x30] sm:$0xff] %v1027
        %1060 = vst [vmem:[%s272 + $0x38] sm:$0xff] %v1028
        %1061 = vst [vmem:[%s272 + $0x40] sm:$0xff] %v1029
        %1062 = vst [vmem:[%s272 + $0x48] sm:$0xff] %v1030
        %1063 = vst [vmem:[%s272 + $0x50] sm:$0xff] %v1031
        %1064 = vst [vmem:[%s272 + $0x58] sm:$0xff] %v1032
        %1065 = vst [vmem:[%s272 + $0x60] sm:$0xff] %v1033
        %1066 = vst [vmem:[%s272 + $0x68] sm:$0xff] %v1034
        %1067 = vst [vmem:[%s272 + $0x70] sm:$0xff] %v1035
        %1068 = vst [vmem:[%s272 + $0x78] sm:$0xff] %v1036
        %1069 = vst [vmem:[%s272 + $0x80] sm:$0xff] %v1037
        %1070 = vst [vmem:[%s272 + $0x88] sm:$0xff] %v1038
        %1071 = vst [vmem:[%s272 + $0x90] sm:$0xff] %v1039
        %1072 = vst [vmem:[%s272 + $0x98] sm:$0xff] %v1040
        %1073 = vst [vmem:[%s272 + $0xa0] sm:$0xff] %v1041
        %1074 = vst [vmem:[%s272 + $0xa8] sm:$0xff] %v1042
        %1075 = vst [vmem:[%s272 + $0xb0] sm:$0xff] %v1043
        %1076 = vst [vmem:[%s272 + $0xb8] sm:$0xff] %v1044
        %1077 = vst [vmem:[%s272 + $0xc0] sm:$0xff] %v1045
        %1078 = vst [vmem:[%s272 + $0xc8] sm:$0xff] %v1046
        %1079 = vst [vmem:[%s272 + $0xd0] sm:$0xff] %v1047
        %1080 = vst [vmem:[%s272 + $0xd8] sm:$0xff] %v1048
        %1081 = vst [vmem:[%s272 + $0xe0] sm:$0xff] %v1049
        %1082 = vst [vmem:[%s272 + $0xe8] sm:$0xff] %v1050
        %1083 = vst [vmem:[%s272 + $0xf0] sm:$0xff] %v1051
        %1084 = vst [vmem:[%s272 + $0xf8] sm:$0xff] %v1052
        %s1085 = sand.u32 %s141, 1
        %s1086 = scalar_lea.sflag [#allocation4], %s1085
        %s1087 = sand.u32 %s141, 1
        %s1088 = smul.addr %s1087, 256
        %s1089 = scalar_lea.vmem [#allocation8], %s1088
        // Predicated region
        $region53: #{tpu_custom_call.1} parent=39 // pred_check
          %p1090 = pneg %p151
        $region54: #{tpu_custom_call.1} parent=39 // pred_check_branch
          %1092 = sbr.rel (%p1090) target = $region56
        $region55: #{tpu_custom_call.1} parent=39 // pred_region
          %s1093 = smul.u32 16, %s23
          %s1095 = ssub.s32 4096, 4096
          %1096 = vsyncadd %s1086, %s1095
          %s1097 = smul.addr %s1093, 2
          %s1098 = smul.addr %s1097, 128
          %s1099 = scalar_lea.hbm %s5, %s1098
          %s1100 = sshll.u32 %s1089, 4
          %s1101 = int_to_ptr.vmem [resolvable:$true] %s1100
          %1106 = dma.vmem_to_hbm [thread:$0]  %s1101, 4096, %s1099, %s1086, 256, 256, 16
        $region56: #{tpu_custom_call.1} parent=39 // pred_fallthru
          _
      $region40: #{tpu_custom_call.1} parent=5 // pred_fallthru
        _
      %p1107 = scmp.le.s32.totalorder 2, %s18
      // Predicated region
      $region57: #{tpu_custom_call.1} parent=5 // pred_check
        %p1108 = pneg %p1107
      $region58: #{tpu_custom_call.1} parent=5 // pred_check_branch
        %1110 = sbr.rel (%p1108) target = $region60
      $region59: #{tpu_custom_call.1} parent=5 // pred_region
        %s1111 = ssub.s32 %s18, 2
        // Predicated region
        $region61: #{tpu_custom_call.1} parent=59 // pred_check
          %p1112 = pneg %p157
        $region62: #{tpu_custom_call.1} parent=59 // pred_check_branch
          %1114 = sbr.rel (%p1112) target = $region64
        $region63: #{tpu_custom_call.1} parent=59 // pred_region
          %s1115 = sand.u32 %s142, 1
          %s1116 = scalar_lea.sflag [#allocation4], %s1115
          %s1117 = sand.u32 %s142, 1
          %s1118 = smul.addr %s1117, 256
          %s1119 = scalar_lea.vmem [#allocation8], %s1118
          %1120 = dma.done %s1116, 4096
        $region64: #{tpu_custom_call.1} parent=59 // pred_fallthru
          _
      $region60: #{tpu_custom_call.1} parent=5 // pred_fallthru
        _
    $region6: #{tpu_custom_call.1} parent=1 // loop_footer
      %s22 = sadd.s32 1, %s18
    $region7: #{tpu_custom_call.1} parent=1 // loop_footer_branch
      %17 = sbr.rel target = $region3
    $region8: #{tpu_custom_call.1} parent=1 // loop_exit
      _
    %1121 = vsyncpa [#allocation3], 1
    %s1122 = scalar_lea.sflag [#allocation3], 1
    %1123 = vsyncpa %s1122, 1
    %1124 = vsyncpa [#allocation6], 1
    %1125 = vsyncpa [#allocation4], 1
    %s1126 = scalar_lea.sflag [#allocation4], 1
    %1127 = vsyncpa %s1126, 1

</llo_original>
